<compile_context>
chip_gen: v5e
topology: v5e:2x2
jax: 0.10.0
libtpu: 0.0.40
codegen_flags: <defaults>
</compile_context>

<pallas_src>
import jax
import jax.numpy as jnp
from jax.experimental import pallas as pl
from jax.experimental.pallas import tpu as pltpu

NEG_SLOPE = 0.01   # nn.LeakyReLU default negative_slope
BN_EPS = 1e-5      # nn.BatchNorm1d default eps


def _lrelu(x):
    return jnp.where(x >= 0, x, NEG_SLOPE * x)


# ---------------------------------------------------------------------------
# Fused Fire kernel (one batch sample per grid step, fully resident in VMEM)
# ---------------------------------------------------------------------------
def _fire_kernel(x_ref, wsq_ref, bsq_ref, wexp_ref, bexp_ref, o_ref):
    """x_ref    : (1, L, Cin)      activations (L on sublanes, channels on lanes)
       wsq_ref  : (Cin, Csq)       squeeze 1x1 weight, BN1 folded
       bsq_ref  : (1, Csq)         squeeze bias, BN1 folded
       wexp_ref : (3, Csq, E1+E3)  merged expand weights (tap-major), BN folded
       bexp_ref : (1, E1+E3)       merged expand bias, BN folded
       o_ref    : (1, L, E1+E3)    lane-dense (channels-last) output
    """
    x = x_ref[0].astype(jnp.float32)                       # (L, Cin)
    L = x.shape[0]

    # squeeze 1x1 conv + folded BN + LeakyReLU
    s = jnp.dot(x, wsq_ref[...], preferred_element_type=jnp.float32)
    s = _lrelu(s + bsq_ref[...])                           # (L, Csq)

    # shifted copies for the 3-tap conv (zeros at the sequence edges)
    zrow = jnp.zeros((1, s.shape[1]), jnp.float32)
    s_prev = jnp.concatenate([zrow, s[:L - 1, :]], axis=0)  # s[l-1]
    s_next = jnp.concatenate([s[1:, :], zrow], axis=0)      # s[l+1]

    # merged expand stage: produces [expand1x1 | expand3x3] channels directly
    y = (jnp.dot(s_prev, wexp_ref[0], preferred_element_type=jnp.float32)
         + jnp.dot(s, wexp_ref[1], preferred_element_type=jnp.float32)
         + jnp.dot(s_next, wexp_ref[2], preferred_element_type=jnp.float32)
         + bexp_ref[...])                                   # (L, E1+E3)

    # per-branch LeakyReLU (branches are disjoint channels) + final LeakyReLU
    o_ref[0] = _lrelu(_lrelu(y)).astype(o_ref.dtype)


# ---------------------------------------------------------------------------
# Host-side parameter preparation (BN folding + layout transpose + merge)
# ---------------------------------------------------------------------------
def _fold_bn(w, b, bn_stats):
    """Fold eval-mode BatchNorm1d into conv weight/bias.
    w: (Cout, Cin, K), b: (Cout,), bn_stats: (gamma, beta, mean, var)."""
    gamma, beta, mean, var = bn_stats
    scale = gamma / jnp.sqrt(var + BN_EPS)
    shift = beta - mean * scale
    return w * scale[:, None, None], b * scale + shift


def prepare_fire_params(p):
    """PyTorch-layout params -> kernel-layout params (BN folded, merged expand)."""
    wsq, bsq = _fold_bn(p['sq_w'], p['sq_b'], p['bn1'])
    we1, be1 = _fold_bn(p['e1_w'], p['e1_b'], p['bn2'])
    we3, be3 = _fold_bn(p['e3_w'], p['e3_b'], p['bn3'])

    Csq = wsq.shape[0]
    E1 = we1.shape[0]
    E3 = we3.shape[0]

    we1_t = jnp.transpose(we1[:, :, 0], (1, 0))            # (Csq, E1)
    we3_t = jnp.transpose(we3, (2, 1, 0))                  # (3, Csq, E3)

    wexp = jnp.zeros((3, Csq, E1 + E3), jnp.float32)
    wexp = wexp.at[1, :, :E1].set(we1_t)                   # center tap: 1x1 branch
    wexp = wexp.at[:, :, E1:].set(we3_t)                   # all taps: 3x3 branch
    bexp = jnp.concatenate([be1, be3]).reshape(1, -1)      # (1, E1+E3)

    return dict(
        wsq=jnp.transpose(wsq[:, :, 0], (1, 0)),           # (Cin, Csq)
        bsq=bsq.reshape(1, -1),                            # (1, Csq)
        wexp=wexp,
        bexp=bexp,
    )


# ---------------------------------------------------------------------------
# Forward wrapper
# ---------------------------------------------------------------------------
@jax.jit
def fire_forward(x, kp):
    """x: (N, Cin, L) in PyTorch layout; returns (N, E1+E3, L)."""
    N, Cin, L = x.shape
    Csq = kp['wsq'].shape[1]
    Cout = kp['wexp'].shape[2]

    xt = jnp.transpose(x, (0, 2, 1)).astype(jnp.float32)   # (N, L, Cin)

    out = pl.pallas_call(
        _fire_kernel,
        out_shape=jax.ShapeDtypeStruct((N, L, Cout), jnp.float32),
        grid=(N,),
        in_specs=[
            pl.BlockSpec((1, L, Cin), lambda n: (n, 0, 0)),
            pl.BlockSpec((Cin, Csq), lambda n: (0, 0)),
            pl.BlockSpec((1, Csq), lambda n: (0, 0)),
            pl.BlockSpec((3, Csq, Cout), lambda n: (0, 0, 0)),
            pl.BlockSpec((1, Cout), lambda n: (0, 0)),
        ],
        out_specs=pl.BlockSpec((1, L, Cout), lambda n: (n, 0, 0)),
        compiler_params=pltpu.CompilerParams(
            dimension_semantics=("parallel",)),
    )(xt, kp['wsq'], kp['bsq'], kp['wexp'], kp['bexp'])

    return jnp.transpose(out, (0, 2, 1))                    # (N, Cout, L)


# ---------------------------------------------------------------------------
# Pure-JAX reference (for in-script verification)
# ---------------------------------------------------------------------------
def _fire_reference(x, p):
    def conv1d(h, w, b, pad):
        o = jax.lax.conv_general_dilated(
            h, w, window_strides=(1,), padding=[(pad, pad)],
            dimension_numbers=('NCH', 'OIH', 'NCH'))
        return o + b[None, :, None]

    def bn(h, stats):
        gamma, beta, mean, var = stats
        scale = gamma / jnp.sqrt(var + BN_EPS)
        shift = beta - mean * scale
        return h * scale[None, :, None] + shift[None, :, None]

    s = _lrelu(bn(conv1d(x, p['sq_w'], p['sq_b'], 0), p['bn1']))
    o1 = _lrelu(bn(conv1d(s, p['e1_w'], p['e1_b'], 0), p['bn2']))
    o3 = _lrelu(bn(conv1d(s, p['e3_w'], p['e3_b'], 1), p['bn3']))
    return _lrelu(jnp.concatenate([o1, o3], axis=1))


# ---------------------------------------------------------------------------
# Deterministic parameter initialization (PyTorch-shaped)
# ---------------------------------------------------------------------------
def init_fire_params(key, inplanes, squeeze_planes, e1_planes, e3_planes):
    ks = jax.random.split(key, 6)

    def conv_init(kw, kb, cout, cin, k):
        bound = 1.0 / ((cin * k) ** 0.5)
        w = jax.random.uniform(kw, (cout, cin, k), jnp.float32, -bound, bound)
        b = jax.random.uniform(kb, (cout,), jnp.float32, -bound, bound)
        return w, b

    def bn_init(c):
        # (gamma, beta, running_mean, running_var) — fresh-module defaults.
        return (jnp.ones((c,), jnp.float32), jnp.zeros((c,), jnp.float32),
                jnp.zeros((c,), jnp.float32), jnp.ones((c,), jnp.float32))

    p = {}
    p['sq_w'], p['sq_b'] = conv_init(ks[0], ks[1], squeeze_planes, inplanes, 1)
    p['bn1'] = bn_init(squeeze_planes)
    p['e1_w'], p['e1_b'] = conv_init(ks[2], ks[3], e1_planes, squeeze_planes, 1)
    p['bn2'] = bn_init(e1_planes)
    p['e3_w'], p['e3_b'] = conv_init(ks[4], ks[5], e3_planes, squeeze_planes, 3)
    p['bn3'] = bn_init(e3_planes)
    return p


if __name__ == "__main__":
    key = jax.random.PRNGKey(0)
    kx, kp = jax.random.split(key)

    # Fire(inplanes=64, squeeze=16, expand1x1=64, expand3x3=64), small seq len.
    N, Cin, L = 2, 64, 16
    Csq, E1, E3 = 16, 64, 64

    x = jax.random.normal(kx, (N, Cin, L), jnp.float32)
    raw_params = init_fire_params(kp, Cin, Csq, E1, E3)
    kernel_params = prepare_fire_params(raw_params)

    out = jax.block_until_ready(fire_forward(x, kernel_params))

    assert out.shape == (N, E1 + E3, L), out.shape
    assert out.dtype == jnp.float32
    assert bool(jnp.all(jnp.isfinite(out)))

    ref = _fire_reference(x, raw_params)
    assert bool(jnp.allclose(out, ref, rtol=1e-3, atol=1e-3)), \
        float(jnp.max(jnp.abs(out - ref)))

    print("KERNEL_OK")
</pallas_src>

<mosaic_0001>
module attributes {stable_mosaic.version = 11 : i64} {
  func.func @_fire_kernel(%arg0: i32, %arg1: memref<1x16x64xf32, #tpu.memory_space<vmem>>, %arg2: memref<64x16xf32, #tpu.memory_space<vmem>>, %arg3: memref<1x16xf32, #tpu.memory_space<vmem>>, %arg4: memref<3x16x128xf32, #tpu.memory_space<vmem>>, %arg5: memref<1x128xf32, #tpu.memory_space<vmem>>, %arg6: memref<1x16x128xf32, #tpu.memory_space<vmem>>) attributes {dimension_semantics = [#tpu.dimension_semantics<parallel>], iteration_bounds = array<i64: 2>, scalar_prefetch = 0 : i64, scratch_operands = 0 : i64, tpu.core_type = #tpu.core_type<tc>, window_params = [{transform_indices = @transform_0, window_bounds = array<i64: 1, 16, 64>}, {pipeline_mode = #tpu.pipeline_mode<synchronous>, transform_indices = @transform_1, window_bounds = array<i64: 64, 16>}, {pipeline_mode = #tpu.pipeline_mode<synchronous>, transform_indices = @transform_2, window_bounds = array<i64: 1, 16>}, {pipeline_mode = #tpu.pipeline_mode<synchronous>, transform_indices = @transform_3, window_bounds = array<i64: 3, 16, 128>}, {pipeline_mode = #tpu.pipeline_mode<synchronous>, transform_indices = @transform_4, window_bounds = array<i64: 1, 128>}, {transform_indices = @transform_5, window_bounds = array<i64: 1, 16, 128>}]} {
    %c0 = arith.constant 0 : index
    %c0_0 = arith.constant 0 : index
    %c0_1 = arith.constant 0 : index
    %0 = vector.load %arg1[%c0, %c0_0, %c0_1] : memref<1x16x64xf32, #tpu.memory_space<vmem>>, vector<1x16x64xf32>
    %1 = vector.shape_cast %0 : vector<1x16x64xf32> to vector<16x64xf32>
    %c0_2 = arith.constant 0 : index
    %c0_3 = arith.constant 0 : index
    %2 = vector.load %arg2[%c0_2, %c0_3] : memref<64x16xf32, #tpu.memory_space<vmem>>, vector<64x16xf32>
    %cst = arith.constant dense<0.000000e+00> : vector<16x16xf32>
    %3 = tpu.matmul %1, %2, %cst {dimension_numbers = #tpu.dot_dimension_numbers<[1], [0], [0], [1], [0, 0, 1, 1], [], []>} : vector<16x64xf32>, vector<64x16xf32>, vector<16x16xf32> -> vector<16x16xf32>
    %c0_4 = arith.constant 0 : index
    %c0_5 = arith.constant 0 : index
    %4 = vector.load %arg3[%c0_4, %c0_5] : memref<1x16xf32, #tpu.memory_space<vmem>>, vector<1x16xf32>
    %5 = vector.broadcast %4 : vector<1x16xf32> to vector<16x16xf32>
    %6 = arith.addf %3, %5 : vector<16x16xf32>
    %cst_6 = arith.constant 0.000000e+00 : f32
    %7 = vector.broadcast %cst_6 : f32 to vector<16x16xf32>
    %8 = arith.cmpf oge, %6, %7 : vector<16x16xf32>
    %cst_7 = arith.constant 0.00999999977 : f32
    %9 = vector.broadcast %cst_7 : f32 to vector<16x16xf32>
    %10 = arith.mulf %9, %6 : vector<16x16xf32>
    %11 = arith.select %8, %6, %10 : vector<16x16xi1>, vector<16x16xf32>
    %cst_8 = arith.constant 0.000000e+00 : f32
    %12 = vector.broadcast %cst_8 : f32 to vector<1x16xf32>
    %13 = vector.extract_strided_slice %11 {offsets = [0, 0], sizes = [15, 16], strides = [1, 1]} : vector<16x16xf32> to vector<15x16xf32>
    %14 = tpu.concatenate %12, %13 in 0 : vector<1x16xf32>, vector<15x16xf32> -> vector<16x16xf32>
    %15 = vector.extract_strided_slice %11 {offsets = [1, 0], sizes = [15, 16], strides = [1, 1]} : vector<16x16xf32> to vector<15x16xf32>
    %16 = tpu.concatenate %15, %12 in 0 : vector<15x16xf32>, vector<1x16xf32> -> vector<16x16xf32>
    %c0_9 = arith.constant 0 : index
    %c0_10 = arith.constant 0 : index
    %c0_11 = arith.constant 0 : index
    %17 = vector.load %arg4[%c0_9, %c0_10, %c0_11] : memref<3x16x128xf32, #tpu.memory_space<vmem>>, vector<1x16x128xf32>
    %18 = vector.shape_cast %17 : vector<1x16x128xf32> to vector<16x128xf32>
    %cst_12 = arith.constant dense<0.000000e+00> : vector<16x128xf32>
    %19 = tpu.matmul %14, %18, %cst_12 {dimension_numbers = #tpu.dot_dimension_numbers<[1], [0], [0], [1], [0, 0, 1, 1], [], []>} : vector<16x16xf32>, vector<16x128xf32>, vector<16x128xf32> -> vector<16x128xf32>
    %c1 = arith.constant 1 : index
    %c0_13 = arith.constant 0 : index
    %c0_14 = arith.constant 0 : index
    %20 = vector.load %arg4[%c1, %c0_13, %c0_14] : memref<3x16x128xf32, #tpu.memory_space<vmem>>, vector<1x16x128xf32>
    %21 = vector.shape_cast %20 : vector<1x16x128xf32> to vector<16x128xf32>
    %cst_15 = arith.constant dense<0.000000e+00> : vector<16x128xf32>
    %22 = tpu.matmul %11, %21, %cst_15 {dimension_numbers = #tpu.dot_dimension_numbers<[1], [0], [0], [1], [0, 0, 1, 1], [], []>} : vector<16x16xf32>, vector<16x128xf32>, vector<16x128xf32> -> vector<16x128xf32>
    %23 = arith.addf %19, %22 : vector<16x128xf32>
    %c2 = arith.constant 2 : index
    %c0_16 = arith.constant 0 : index
    %c0_17 = arith.constant 0 : index
    %24 = vector.load %arg4[%c2, %c0_16, %c0_17] : memref<3x16x128xf32, #tpu.memory_space<vmem>>, vector<1x16x128xf32>
    %25 = vector.shape_cast %24 : vector<1x16x128xf32> to vector<16x128xf32>
    %cst_18 = arith.constant dense<0.000000e+00> : vector<16x128xf32>
    %26 = tpu.matmul %16, %25, %cst_18 {dimension_numbers = #tpu.dot_dimension_numbers<[1], [0], [0], [1], [0, 0, 1, 1], [], []>} : vector<16x16xf32>, vector<16x128xf32>, vector<16x128xf32> -> vector<16x128xf32>
    %27 = arith.addf %23, %26 : vector<16x128xf32>
    %c0_19 = arith.constant 0 : index
    %c0_20 = arith.constant 0 : index
    %28 = vector.load %arg5[%c0_19, %c0_20] : memref<1x128xf32, #tpu.memory_space<vmem>>, vector<1x128xf32>
    %29 = vector.broadcast %28 : vector<1x128xf32> to vector<16x128xf32>
    %30 = arith.addf %27, %29 : vector<16x128xf32>
    %cst_21 = arith.constant 0.000000e+00 : f32
    %31 = vector.broadcast %cst_21 : f32 to vector<16x128xf32>
    %32 = arith.cmpf oge, %30, %31 : vector<16x128xf32>
    %cst_22 = arith.constant 0.00999999977 : f32
    %33 = vector.broadcast %cst_22 : f32 to vector<16x128xf32>
    %34 = arith.mulf %33, %30 : vector<16x128xf32>
    %35 = arith.select %32, %30, %34 : vector<16x128xi1>, vector<16x128xf32>
    %cst_23 = arith.constant 0.000000e+00 : f32
    %36 = vector.broadcast %cst_23 : f32 to vector<16x128xf32>
    %37 = arith.cmpf oge, %35, %36 : vector<16x128xf32>
    %cst_24 = arith.constant 0.00999999977 : f32
    %38 = vector.broadcast %cst_24 : f32 to vector<16x128xf32>
    %39 = arith.mulf %38, %35 : vector<16x128xf32>
    %40 = arith.select %37, %35, %39 : vector<16x128xi1>, vector<16x128xf32>
    %c0_25 = arith.constant 0 : index
    %c0_26 = arith.constant 0 : index
    %c0_27 = arith.constant 0 : index
    %41 = vector.load %arg6[%c0_25, %c0_26, %c0_27] : memref<1x16x128xf32, #tpu.memory_space<vmem>>, vector<1x16x128xf32>
    %42 = vector.shape_cast %41 : vector<1x16x128xf32> to vector<16x128xf32>
    %43 = vector.shape_cast %40 : vector<16x128xf32> to vector<1x16x128xf32>
    tpu.vector_store %arg6[%c0_25, %c0_26, %c0_27], %43 {strides = array<i32>} : memref<1x16x128xf32, #tpu.memory_space<vmem>>, vector<1x16x128xf32>,
    return
  }
  func.func @transform_0(%arg0: i32) -> (i32, i32, i32) {
    %c0_i32 = arith.constant 0 : i32
    %c0_i32_0 = arith.constant 0 : i32
    %c0_i32_1 = arith.constant 0 : i32
    return %arg0, %c0_i32, %c0_i32_0 : i32, i32, i32
  }
  func.func @transform_1(%arg0: i32) -> (i32, i32) {
    %c0_i32 = arith.constant 0 : i32
    %c0_i32_0 = arith.constant 0 : i32
    %c0_i32_1 = arith.constant 0 : i32
    return %c0_i32, %c0_i32_0 : i32, i32
  }
  func.func @transform_2(%arg0: i32) -> (i32, i32) {
    %c0_i32 = arith.constant 0 : i32
    %c0_i32_0 = arith.constant 0 : i32
    %c0_i32_1 = arith.constant 0 : i32
    return %c0_i32, %c0_i32_0 : i32, i32
  }
  func.func @transform_3(%arg0: i32) -> (i32, i32, i32) {
    %c0_i32 = arith.constant 0 : i32
    %c0_i32_0 = arith.constant 0 : i32
    %c0_i32_1 = arith.constant 0 : i32
    %c0_i32_2 = arith.constant 0 : i32
    return %c0_i32, %c0_i32_0, %c0_i32_1 : i32, i32, i32
  }
  func.func @transform_4(%arg0: i32) -> (i32, i32) {
    %c0_i32 = arith.constant 0 : i32
    %c0_i32_0 = arith.constant 0 : i32
    %c0_i32_1 = arith.constant 0 : i32
    return %c0_i32, %c0_i32_0 : i32, i32
  }
  func.func @transform_5(%arg0: i32) -> (i32, i32, i32) {
    %c0_i32 = arith.constant 0 : i32
    %c0_i32_0 = arith.constant 0 : i32
    %c0_i32_1 = arith.constant 0 : i32
    return %arg0, %c0_i32, %c0_i32_0 : i32, i32, i32
  }
}

</mosaic_0001>

<llo_original>
// kernel: fire_forward.1
$region0: #{fire_forward.1}
  #allocation0 [shape = 'u32[]', space=smem, size = 0x4, offset = 0x4, fixed_abs, tag = 'smem constant byte address 0x4 - core index']
  #allocation1 [shape = 'u32[72,128]{1,0:T(1,128)}', space=vmem, size = 0x9000, scoped, tag = 'internal scratch']
  %s0 = inlined_call_operand.vmem [shape: f32[2,16,64], index: 0, kind: input, shape index: {}]
  %s1 = inlined_call_operand.vmem [shape: f32[64,16], index: 1, kind: input, shape index: {}]
  %s2 = inlined_call_operand.vmem [shape: f32[1,16], index: 2, kind: input, shape index: {}]
  %s3 = inlined_call_operand.vmem [shape: f32[3,16,128], index: 3, kind: input, shape index: {}]
  %s4 = inlined_call_operand.vmem [shape: f32[1,128], index: 4, kind: input, shape index: {}]
  %s5 = inlined_call_operand.hbm [shape: f32[2,16,128], index: 5, kind: output, shape index: {}]
  %s6 = sld [smem:[#allocation0]]
  $region53: #{fire_forward.1} parent=0
    _
  %s8 = ssub.s32 1, %s6
  %s9 = scalar_select 0, %s8, %s6
  $region1: #{fire_forward.1} parent=0
    #allocation2 [shape = 'u8[16384]{0}', space=vmem, size = 0x4000, scoped, tag = 'output window, operand 0']
    #allocation3 [shape = 's32[2]{0}', space=sflag, size = 0x8, scoped, tag = 'scoped memory for fire_forward.1']
    %10 = vsyncpa [#allocation3], 0
    %s11 = scalar_lea.sflag [#allocation3], 1
    %12 = vsyncpa %s11, 0
    loop: start=0, step=1, limit=4
    $region2: #{fire_forward.1} parent=1 // loop_pre_header
      _
    $region3: #{fire_forward.1} parent=1 // loop_header
      %s14 = sphi 0, %s18
      %p15 = scmp.ge.s32.totalorder %s14, 4
      %s24 = sphi 0, %s26
      %s27 = sphi 0, %s24
      %s28 = sphi 0, %s27
      %s44 = sphi 0, %s28
      %s48 = sphi 0, %s48
      %s50 = sphi 0, %s48
      %s51 = sphi 0, %s50
      %s65 = sphi 0, %s51
      %s69 = sphi 0, %s69
      %s71 = sphi 0, %s69
      %s72 = sphi 0, %s71
      %s86 = sphi 0, %s72
      %s90 = sphi 0, %s90
      %s92 = sphi 0, %s90
      %s93 = sphi 0, %s92
      %s107 = sphi 0, %s93
      %s111 = sphi 0, %s111
      %s113 = sphi 0, %s111
      %s114 = sphi 0, %s113
      %s128 = sphi 0, %s114
      %s134 = sphi 0, %s136
      %s137 = sphi 0, %s134
      %s138 = sphi 0, %s137
      %s154 = sphi 0, %s138
    $region4: #{fire_forward.1} parent=1 // loop_header_branch
      %17 = sbr.rel (%p15) target = $region8
    $region5: #{fire_forward.1} parent=1 // loop_body
      %s19 = ssub.s32 %s14, 1
      %s20 = ssub.s32 %s14, 2
      %s21 = sadd.s32 %s14, 1
      %s22 = ssub.s32 %s14, %s21
      %p23 = scmp.eq.s32.totalorder %s22, 0
      %s25 = sadd.s32 %s24, 1
      %s26 = scalar_select %p23, %s24, %s25
      %p29 = pneg %p23
      %p30 = scmp.eq.s32.totalorder %s14, 1
      %p31 = por %p29, %p30
      %p32 = scmp.ne.s32.totalorder %s24, %s27
      %p33 = scmp.eq.s32.totalorder %s14, 0
      %p34 = por %p32, %p33
      %p35 = scmp.ne.s32.totalorder %s24, %s27
      %p36 = scmp.eq.s32.totalorder %s19, 1
      %p37 = por %p35, %p36
      %p38 = scmp.ne.s32.totalorder %s27, %s28
      %p39 = scmp.eq.s32.totalorder %s19, 0
      %p40 = por %p38, %p39
      %p41 = scmp.ne.s32.totalorder %s27, %s28
      %p42 = scmp.eq.s32.totalorder %s20, 1
      %p43 = por %p41, %p42
      %p45 = scmp.ne.s32.totalorder %s28, %s44
      %p46 = scmp.eq.s32.totalorder %s20, 0
      %p47 = por %p45, %p46
      %s49 = sadd.s32 %s48, 1
      %p52 = scmp.eq.s32.totalorder %s14, 1
      %p53 = scmp.ne.s32.totalorder %s48, %s50
      %p54 = scmp.eq.s32.totalorder %s14, 0
      %p55 = por %p53, %p54
      %p56 = scmp.ne.s32.totalorder %s48, %s50
      %p57 = scmp.eq.s32.totalorder %s19, 1
      %p58 = por %p56, %p57
      %p59 = scmp.ne.s32.totalorder %s50, %s51
      %p60 = scmp.eq.s32.totalorder %s19, 0
      %p61 = por %p59, %p60
      %p62 = scmp.ne.s32.totalorder %s50, %s51
      %p63 = scmp.eq.s32.totalorder %s20, 1
      %p64 = por %p62, %p63
      %p66 = scmp.ne.s32.totalorder %s51, %s65
      %p67 = scmp.eq.s32.totalorder %s20, 0
      %p68 = por %p66, %p67
      %s70 = sadd.s32 %s69, 1
      %p73 = scmp.eq.s32.totalorder %s14, 1
      %p74 = scmp.ne.s32.totalorder %s69, %s71
      %p75 = scmp.eq.s32.totalorder %s14, 0
      %p76 = por %p74, %p75
      %p77 = scmp.ne.s32.totalorder %s69, %s71
      %p78 = scmp.eq.s32.totalorder %s19, 1
      %p79 = por %p77, %p78
      %p80 = scmp.ne.s32.totalorder %s71, %s72
      %p81 = scmp.eq.s32.totalorder %s19, 0
      %p82 = por %p80, %p81
      %p83 = scmp.ne.s32.totalorder %s71, %s72
      %p84 = scmp.eq.s32.totalorder %s20, 1
      %p85 = por %p83, %p84
      %p87 = scmp.ne.s32.totalorder %s72, %s86
      %p88 = scmp.eq.s32.totalorder %s20, 0
      %p89 = por %p87, %p88
      %s91 = sadd.s32 %s90, 1
      %p94 = scmp.eq.s32.totalorder %s14, 1
      %p95 = scmp.ne.s32.totalorder %s90, %s92
      %p96 = scmp.eq.s32.totalorder %s14, 0
      %p97 = por %p95, %p96
      %p98 = scmp.ne.s32.totalorder %s90, %s92
      %p99 = scmp.eq.s32.totalorder %s19, 1
      %p100 = por %p98, %p99
      %p101 = scmp.ne.s32.totalorder %s92, %s93
      %p102 = scmp.eq.s32.totalorder %s19, 0
      %p103 = por %p101, %p102
      %p104 = scmp.ne.s32.totalorder %s92, %s93
      %p105 = scmp.eq.s32.totalorder %s20, 1
      %p106 = por %p104, %p105
      %p108 = scmp.ne.s32.totalorder %s93, %s107
      %p109 = scmp.eq.s32.totalorder %s20, 0
      %p110 = por %p108, %p109
      %s112 = sadd.s32 %s111, 1
      %p115 = scmp.eq.s32.totalorder %s14, 1
      %p116 = scmp.ne.s32.totalorder %s111, %s113
      %p117 = scmp.eq.s32.totalorder %s14, 0
      %p118 = por %p116, %p117
      %p119 = scmp.ne.s32.totalorder %s111, %s113
      %p120 = scmp.eq.s32.totalorder %s19, 1
      %p121 = por %p119, %p120
      %p122 = scmp.ne.s32.totalorder %s113, %s114
      %p123 = scmp.eq.s32.totalorder %s19, 0
      %p124 = por %p122, %p123
      %p125 = scmp.ne.s32.totalorder %s113, %s114
      %p126 = scmp.eq.s32.totalorder %s20, 1
      %p127 = por %p125, %p126
      %p129 = scmp.ne.s32.totalorder %s114, %s128
      %p130 = scmp.eq.s32.totalorder %s20, 0
      %p131 = por %p129, %p130
      %s132 = ssub.s32 %s14, %s21
      %p133 = scmp.eq.s32.totalorder %s132, 0
      %s135 = sadd.s32 %s134, 1
      %s136 = scalar_select %p133, %s134, %s135
      %p139 = pneg %p133
      %p140 = scmp.eq.s32.totalorder %s14, 1
      %p141 = por %p139, %p140
      %p142 = scmp.ne.s32.totalorder %s134, %s137
      %p143 = scmp.eq.s32.totalorder %s14, 0
      %p144 = por %p142, %p143
      %p145 = scmp.ne.s32.totalorder %s134, %s137
      %p146 = scmp.eq.s32.totalorder %s19, 1
      %p147 = por %p145, %p146
      %p148 = scmp.ne.s32.totalorder %s137, %s138
      %p149 = scmp.eq.s32.totalorder %s19, 0
      %p150 = por %p148, %p149
      %p151 = scmp.ne.s32.totalorder %s137, %s138
      %p152 = scmp.eq.s32.totalorder %s20, 1
      %p153 = por %p151, %p152
      %p155 = scmp.ne.s32.totalorder %s138, %s154
      %p156 = scmp.eq.s32.totalorder %s20, 0
      %p157 = por %p155, %p156
      %p158 = scmp.le.s32.totalorder 1, %s14
      %p159 = scmp.lt.s32.totalorder %s14, 3
      %p160 = pnand %p158, %p159
      %p161 = pneg %p160
      // Predicated region
      $region9: #{fire_forward.1} parent=5 // pred_check
        _
      $region10: #{fire_forward.1} parent=5 // pred_check_branch
        %163 = sbr.rel (%p160) target = $region12
      $region11: #{fire_forward.1} parent=5 // pred_region
        %s164 = ssub.s32 %s14, 1
        // Predicated region
        $region13: #{fire_forward.1} parent=11 // pred_check
          %p165 = pneg %p61
        $region14: #{fire_forward.1} parent=11 // pred_check_branch
          %167 = sbr.rel (%p165) target = $region16
        $region15: #{fire_forward.1} parent=11 // pred_region
          _
        $region16: #{fire_forward.1} parent=11 // pred_fallthru
          _
        // Predicated region
        $region17: #{fire_forward.1} parent=11 // pred_check
          %p168 = pneg %p82
        $region18: #{fire_forward.1} parent=11 // pred_check_branch
          %170 = sbr.rel (%p168) target = $region20
        $region19: #{fire_forward.1} parent=11 // pred_region
          _
        $region20: #{fire_forward.1} parent=11 // pred_fallthru
          _
        // Predicated region
        $region21: #{fire_forward.1} parent=11 // pred_check
          %p171 = pneg %p103
        $region22: #{fire_forward.1} parent=11 // pred_check_branch
          %173 = sbr.rel (%p171) target = $region24
        $region23: #{fire_forward.1} parent=11 // pred_region
          _
        $region24: #{fire_forward.1} parent=11 // pred_fallthru
          _
        // Predicated region
        $region25: #{fire_forward.1} parent=11 // pred_check
          %p174 = pneg %p124
        $region26: #{fire_forward.1} parent=11 // pred_check_branch
          %176 = sbr.rel (%p174) target = $region28
        $region27: #{fire_forward.1} parent=11 // pred_region
          _
        $region28: #{fire_forward.1} parent=11 // pred_fallthru
          _
      $region12: #{fire_forward.1} parent=5 // pred_fallthru
        _
      %p177 = scmp.lt.s32.totalorder %s14, 2
      // Predicated region
      $region29: #{fire_forward.1} parent=5 // pred_check
        %p178 = pneg %p177
      $region30: #{fire_forward.1} parent=5 // pred_check_branch
        %180 = sbr.rel (%p178) target = $region32
      $region31: #{fire_forward.1} parent=5 // pred_region
        // Predicated region
        $region33: #{fire_forward.1} parent=31 // pred_check
          %p181 = pneg %p34
        $region34: #{fire_forward.1} parent=31 // pred_check_branch
          %183 = sbr.rel (%p181) target = $region36
        $region35: #{fire_forward.1} parent=31 // pred_region
          %p184 = scmp.lt.s32.totalorder %s14, 1
          %s185 = scalar_select %p184, %s14, 1
          %s186 = smul.addr %s185, 2
          %s187 = smul.addr %s186, 8
          %s188 = scalar_lea.vmem %s0, %s187
        $region36: #{fire_forward.1} parent=31 // pred_fallthru
          _
      $region32: #{fire_forward.1} parent=5 // pred_fallthru
        _
      %p189 = scmp.le.s32.totalorder 1, %s14
      %p190 = scmp.lt.s32.totalorder %s14, 3
      %p191 = pnand %p189, %p190
      %p192 = pneg %p191
      // Predicated region
      $region37: #{fire_forward.1} parent=5 // pred_check
        _
      $region38: #{fire_forward.1} parent=5 // pred_check_branch
        %194 = sbr.rel (%p191) target = $region40
      $region39: #{fire_forward.1} parent=5 // pred_region
        %s195 = ssub.s32 %s14, 1
        %p196 = scmp.lt.s32.totalorder %s19, 1
        %s197 = scalar_select %p196, %s19, 1
        %s198 = smul.addr %s197, 2
        %s199 = smul.addr %s198, 8
        %s200 = scalar_lea.vmem %s0, %s199
        %p201 = pneg %p40
        %p202 = pneg %p37
        %p203 = pneg %p61
        %p204 = pneg %p58
        %p205 = pneg %p82
        %p206 = pneg %p79
        %p207 = pneg %p103
        %p208 = pneg %p100
        %p209 = pneg %p124
        %p210 = pneg %p121
        %p211 = pneg %p150
        %p212 = pneg %p147
        %s213 = sand.u32 %s137, 1
        %s214 = scalar_lea.sflag [#allocation3], %s213
        %s215 = sand.u32 %s137, 1
        %s216 = smul.addr %s215, 16
        %s217 = scalar_lea.vmem [#allocation2], %s216
        %p218 = scmp.lt.s32.totalorder %s19, 1
        %s219 = scalar_select %p218, %s19, 1
        %s220 = smul.addr %s219, 2
        %s221 = smul.addr %s220, 8
        %s222 = scalar_lea.vmem %s0, %s221
        %v223 = vld [vmem:[%s222] sm:$0xff]
        %v224 = vld [vmem:[%s222 + $0x8] sm:$0xff]
        %v225 = vld [vmem:[%s1] sm:$0xff]
        %v226 = vld [vmem:[%s1 + $0x8] sm:$0xff]
        %v227 = vld [vmem:[%s1 + $0x10] sm:$0xff]
        %v228 = vld [vmem:[%s1 + $0x18] sm:$0xff]
        %v229 = vld [vmem:[%s1 + $0x20] sm:$0xff]
        %v230 = vld [vmem:[%s1 + $0x28] sm:$0xff]
        %v231 = vld [vmem:[%s1 + $0x30] sm:$0xff]
        %v232 = vld [vmem:[%s1 + $0x38] sm:$0xff]
        %v233 = vld [vmem:[%s2] sm:$0x1]
        %v235 = vperm.slane %v233, 0
        %vm237 = vcmask 523264
        %v239 = vsel %vm237, %v223, 0
        %v242 = vsel %vm237, %v224, 0
        %244 = vmatpush.msra.mxu0 0.0
        %245 = vmatpush.msra.mxu0 0.0
        %246 = vmatpush.msra.mxu0 0.0
        %247 = vmatpush.msra.mxu0 0.0
        %248 = vmatpush.msra.mxu0 0.0
        %249 = vmatpush.msra.mxu0 0.0
        %250 = vmatpush.msra.mxu0 0.0
        %251 = vmatpush.msra.mxu0 0.0
        %252 = vmatpush.msra.mxu0 %v232
        %253 = vmatpush.msra.mxu0 %v231
        %254 = vmatpush.msra.mxu0 %v230
        %255 = vmatpush.msra.mxu0 %v229
        %256 = vmatpush.msra.mxu0 %v228
        %257 = vmatpush.msra.mxu0 %v227
        %258 = vmatpush.msra.mxu0 %v226
        %259 = vmatpush.msra.mxu0 %v225
        %260 = vmatmul.f32.gmra.mxu0 %v239
        %v261 = vpop.f32.mrf.mxu0
        %v262 = vadd.f32 %v235, %v261
        %263 = vmatmul.f32.gmra.mxu0 %v242
        %v264 = vpop.f32.mrf.mxu0
        %v265 = vadd.f32 %v235, %v264
        %266 = vdwg.mxu0
        %vm267 = vcmp.ge.f32.partialorder %v262, 0.0
        %vm268 = vcmp.ge.f32.partialorder %v265, 0.0
        %v269 = vmul.f32 %v262, 0.01
        %v270 = vmul.f32 %v265, 0.01
        %v271 = vsel %vm267, %v262, %v269
        %v272 = vsel %vm268, %v265, %v270
        %vm275 = vcmask 1040384
        %v276 = vrot.slane %v271, 7
        %v277 = vrot.slane %v272, 7
        %v278 = vsel %vm275, %v276, %v277
        %v280 = vsel %vm275, 0.0, %v276
        %vm281 = vcmask 1046528
        %v282 = vrot.slane %v271, 1
        %v283 = vrot.slane %v272, 1
        %v284 = vsel %vm281, %v282, %v283
        %v286 = vsel %vm281, %v283, 0.0
        %v287 = vld [vmem:[%s3] sm:$0xff]
        %v288 = vld [vmem:[%s3 + $0x8] sm:$0xff]
        %s289 = scalar_lea.vmem %s3, 16
        %v290 = vld [vmem:[%s289] sm:$0xff]
        %v291 = vld [vmem:[%s289 + $0x8] sm:$0xff]
        %vm292 = vcmask 130048
        %v293 = vsel %vm292, %v271, 0
        %v295 = vsel %vm292, %v272, 0
        %297 = vmatpush.msra.mxu0 0.0
        %298 = vmatpush.msra.mxu0 0.0
        %299 = vmatpush.msra.mxu0 0.0
        %300 = vmatpush.msra.mxu0 0.0
        %301 = vmatpush.msra.mxu0 0.0
        %302 = vmatpush.msra.mxu0 0.0
        %303 = vmatpush.msra.mxu0 0.0
        %304 = vmatpush.msra.mxu0 0.0
        %305 = vmatpush.msra.mxu0 0.0
        %306 = vmatpush.msra.mxu0 0.0
        %307 = vmatpush.msra.mxu0 0.0
        %308 = vmatpush.msra.mxu0 0.0
        %309 = vmatpush.msra.mxu0 0.0
        %310 = vmatpush.msra.mxu0 0.0
        %311 = vmatpush.msra.mxu0 %v291
        %312 = vmatpush.msra.mxu0 %v290
        %313 = vmatmul.f32.gmra.mxu0 %v293
        %v314 = vpop.f32.mrf.mxu0
        %v315 = vadd.f32 0.0, %v314
        %316 = vmatmul.f32.gmra.mxu0 %v295
        %v317 = vpop.f32.mrf.mxu0
        %v318 = vadd.f32 0.0, %v317
        %319 = vdwg.mxu0
        %v321 = vsel %vm292, %v280, 0
        %v323 = vsel %vm292, %v278, 0
        %325 = vmatpush.msra.mxu0 0.0
        %326 = vmatpush.msra.mxu0 0.0
        %327 = vmatpush.msra.mxu0 0.0
        %328 = vmatpush.msra.mxu0 0.0
        %329 = vmatpush.msra.mxu0 0.0
        %330 = vmatpush.msra.mxu0 0.0
        %331 = vmatpush.msra.mxu0 0.0
        %332 = vmatpush.msra.mxu0 0.0
        %333 = vmatpush.msra.mxu0 0.0
        %334 = vmatpush.msra.mxu0 0.0
        %335 = vmatpush.msra.mxu0 0.0
        %336 = vmatpush.msra.mxu0 0.0
        %337 = vmatpush.msra.mxu0 0.0
        %338 = vmatpush.msra.mxu0 0.0
        %339 = vmatpush.msra.mxu0 %v288
        %340 = vmatpush.msra.mxu0 %v287
        %341 = vmatmul.f32.gmra.mxu0 %v321
        %v342 = vpop.f32.mrf.mxu0
        %v343 = vadd.f32 %v315, %v342
        %344 = vmatmul.f32.gmra.mxu0 %v323
        %v345 = vpop.f32.mrf.mxu0
        %v346 = vadd.f32 %v318, %v345
        %347 = vdwg.mxu0
        %s348 = scalar_lea.vmem %s3, 32
        %v349 = vld [vmem:[%s348] sm:$0xff]
        %v350 = vld [vmem:[%s348 + $0x8] sm:$0xff]
        %v351 = vsel %vm292, %v284, 0
        %v354 = vsel %vm292, %v286, 0
        %356 = vmatpush.msra.mxu0 0.0
        %357 = vmatpush.msra.mxu0 0.0
        %358 = vmatpush.msra.mxu0 0.0
        %359 = vmatpush.msra.mxu0 0.0
        %360 = vmatpush.msra.mxu0 0.0
        %361 = vmatpush.msra.mxu0 0.0
        %362 = vmatpush.msra.mxu0 0.0
        %363 = vmatpush.msra.mxu0 0.0
        %364 = vmatpush.msra.mxu0 0.0
        %365 = vmatpush.msra.mxu0 0.0
        %366 = vmatpush.msra.mxu0 0.0
        %367 = vmatpush.msra.mxu0 0.0
        %368 = vmatpush.msra.mxu0 0.0
        %369 = vmatpush.msra.mxu0 0.0
        %370 = vmatpush.msra.mxu0 %v350
        %371 = vmatpush.msra.mxu0 %v349
        %372 = vmatmul.f32.gmra.mxu0 %v351
        %v373 = vpop.f32.mrf.mxu0
        %v374 = vadd.f32 0.0, %v373
        %375 = vmatmul.f32.gmra.mxu0 %v354
        %v376 = vpop.f32.mrf.mxu0
        %v377 = vadd.f32 0.0, %v376
        %378 = vdwg.mxu0
        %v379 = vadd.f32 %v343, %v374
        %v380 = vadd.f32 %v346, %v377
        %v381 = vld [vmem:[%s4] sm:$0x1]
        %v383 = vperm.slane %v381, 0
        %v385 = vadd.f32 %v379, %v383
        %v386 = vadd.f32 %v380, %v383
        %vm387 = vcmp.ge.f32.partialorder %v385, 0.0
        %vm388 = vcmp.ge.f32.partialorder %v386, 0.0
        %v389 = vmul.f32 %v385, 0.01
        %v390 = vmul.f32 %v386, 0.01
        %v391 = vsel %vm387, %v385, %v389
        %v392 = vsel %vm388, %v386, %v390
        %vm393 = vcmp.ge.f32.partialorder %v391, 0.0
        %vm394 = vcmp.ge.f32.partialorder %v392, 0.0
        %v395 = vmul.f32 %v391, 0.01
        %v396 = vmul.f32 %v392, 0.01
        %v397 = vsel %vm393, %v391, %v395
        %v398 = vsel %vm394, %v392, %v396
        %399 = vst [vmem:[%s217] sm:$0xff] %v397
        %400 = vst [vmem:[%s217 + $0x8] sm:$0xff] %v398
        %s401 = sand.u32 %s137, 1
        %s402 = scalar_lea.sflag [#allocation3], %s401
        %s403 = sand.u32 %s137, 1
        %s404 = smul.addr %s403, 16
        %s405 = scalar_lea.vmem [#allocation2], %s404
        // Predicated region
        $region41: #{fire_forward.1} parent=39 // pred_check
          %p406 = pneg %p147
        $region42: #{fire_forward.1} parent=39 // pred_check_branch
          %408 = sbr.rel (%p406) target = $region44
        $region43: #{fire_forward.1} parent=39 // pred_region
          %410 = vsyncadd %s402, 0
          %s411 = smul.addr %s19, 2
          %s412 = smul.addr %s411, 8
          %s413 = scalar_lea.hbm %s5, %s412
          %s414 = sshll.u32 %s405, 4
          %s415 = int_to_ptr.vmem [resolvable:$true] %s414
          %s416 = sshll.u32 %s413, 4
          %s417 = int_to_ptr.hbm [resolvable:$true] %s416
          %422 = dma.vmem_to_hbm [thread:$0]  %s415, 256, %s417, %s402, 128, 128, 8
        $region44: #{fire_forward.1} parent=39 // pred_fallthru
          _
      $region40: #{fire_forward.1} parent=5 // pred_fallthru
        _
      %p423 = scmp.le.s32.totalorder 2, %s14
      // Predicated region
      $region45: #{fire_forward.1} parent=5 // pred_check
        %p424 = pneg %p423
      $region46: #{fire_forward.1} parent=5 // pred_check_branch
        %426 = sbr.rel (%p424) target = $region48
      $region47: #{fire_forward.1} parent=5 // pred_region
        %s427 = ssub.s32 %s14, 2
        // Predicated region
        $region49: #{fire_forward.1} parent=47 // pred_check
          %p428 = pneg %p153
        $region50: #{fire_forward.1} parent=47 // pred_check_branch
          %430 = sbr.rel (%p428) target = $region52
        $region51: #{fire_forward.1} parent=47 // pred_region
          %s431 = sand.u32 %s138, 1
          %s432 = scalar_lea.sflag [#allocation3], %s431
          %s433 = sand.u32 %s138, 1
          %s434 = smul.addr %s433, 16
          %s435 = scalar_lea.vmem [#allocation2], %s434
          %437 = dma.done %s432, 256
        $region52: #{fire_forward.1} parent=47 // pred_fallthru
          _
      $region48: #{fire_forward.1} parent=5 // pred_fallthru
        _
    $region6: #{fire_forward.1} parent=1 // loop_footer
      %s18 = sadd.s32 1, %s14
    $region7: #{fire_forward.1} parent=1 // loop_footer_branch
      %13 = sbr.rel target = $region3
    $region8: #{fire_forward.1} parent=1 // loop_exit
      _
    %438 = vsyncpa [#allocation3], 1
    %s439 = scalar_lea.sflag [#allocation3], 1
    %440 = vsyncpa %s439, 1

</llo_original>
